<compile_context>
chip_gen: v6e
topology: v6e:2x2x1
jax: 0.10.0
libtpu: 0.0.40
codegen_flags: <defaults>
</compile_context>

<pallas_src>
import functools

import jax
import jax.numpy as jnp
from jax.experimental import pallas as pl
from jax.experimental.pallas import tpu as pltpu


def _round_up(v, m):
    return ((v + m - 1) // m) * m


# ----------------------------------------------------------------------------
# Single fused kernel:
#   L x GINConv  ->  global mean pool  ->  lin1 + ReLU  ->  lin2  -> log_softmax
# ----------------------------------------------------------------------------
def gin_fused_kernel(adj_ref, x_ref, w1s_ref, b1s_ref, w2s_ref, b2s_ref,
                     scale_ref, shift_ref, pool_ref, wl1_ref, bl1_ref,
                     wl2_ref, bl2_ref, out_ref, *, num_layers):
    f32 = jnp.float32
    bf16 = jnp.bfloat16

    adj = adj_ref[...]                       # bf16 [Np, Np], self-loop folded in
    h = x_ref[...]                           # bf16 [Np, Hp]

    for l in range(num_layers):              # small static layer count -> unroll
        # (1+eps)*h_i + sum_{j->i} h_j  ==  (A + (1+eps) I) @ h
        agg = jnp.dot(adj, h, preferred_element_type=f32)
        z = jnp.dot(agg.astype(bf16), w1s_ref[l],
                    preferred_element_type=f32) + b1s_ref[l]
        z = jnp.maximum(z, 0.0)
        z = jnp.dot(z.astype(bf16), w2s_ref[l],
                    preferred_element_type=f32) + b2s_ref[l]
        z = jnp.maximum(z, 0.0)
        # BatchNorm1d (eval) folded to affine:
        #   scale = gamma * rsqrt(var + 1e-5), shift = beta - mean * scale
        z = z * scale_ref[l] + shift_ref[l]
        h = z.astype(bf16)

    # global mean pool: P[g, i] = 1/|V_g| if batch[i] == g
    pooled = jnp.dot(pool_ref[...], h, preferred_element_type=f32)   # [Gp, Hp]
    t = jnp.dot(pooled.astype(bf16), wl1_ref[...],
                preferred_element_type=f32) + bl1_ref[...]
    t = jnp.maximum(t, 0.0)
    # dropout(p=0.5) in eval mode == identity
    logits = jnp.dot(t.astype(bf16), wl2_ref[...],
                     preferred_element_type=f32) + bl2_ref[...]
    # numerically stable log_softmax; padded class lanes carry a -1e30 bias,
    # so exp() underflows to 0 and they never affect max / sum.
    m = jnp.max(logits, axis=-1, keepdims=True)
    zl = logits - m
    lse = jnp.log(jnp.sum(jnp.exp(zl), axis=-1, keepdims=True))
    out_ref[...] = zl - lse


# ----------------------------------------------------------------------------
# Host-side wrapper: padding, BN folding, self-loop folding, bf16 casts.
# ----------------------------------------------------------------------------
def gin_forward(x, adj, pool, conv_params, lin1, lin2, eps=0.0):
    """x: [N, F] f32; adj[dst, src] = #edges src->dst; pool: [G, N] mean-pool."""
    N, F = x.shape
    L = len(conv_params)
    H = conv_params[0]["w1"].shape[1]
    C = lin2["w"].shape[1]
    G = pool.shape[0]

    Hp = _round_up(max(F, H), 128)   # shared lane-padded feature/hidden width
    Cp = _round_up(C, 128)
    Gp = _round_up(G, 8)
    Np = _round_up(N, 8)

    f32, bf16 = jnp.float32, jnp.bfloat16

    def pad2(a, rows, cols, fill=0.0):
        return jnp.pad(a, ((0, rows - a.shape[0]), (0, cols - a.shape[1])),
                       constant_values=fill)

    # Self-loop folded into the adjacency: A' = A + (1+eps)*I.
    # (All layers' trainable eps are initialised to 0 (train_eps=True), so a
    #  single folded adjacency serves every layer.)
    adj_sl = (pad2(adj.astype(f32), Np, Np)
              + (1.0 + eps) * jnp.eye(Np, dtype=f32)).astype(bf16)
    x_p = pad2(x.astype(f32), Np, Hp).astype(bf16)

    # Stack per-layer MLP weights; layer 0's W1 is [F, H], the rest [H, H] —
    # zero-padding to [Hp, Hp] makes them uniform.
    w1s = jnp.stack([pad2(p["w1"], Hp, Hp) for p in conv_params]).astype(bf16)
    b1s = jnp.stack([pad2(p["b1"], 1, Hp) for p in conv_params]).astype(f32)
    w2s = jnp.stack([pad2(p["w2"], Hp, Hp) for p in conv_params]).astype(bf16)
    b2s = jnp.stack([pad2(p["b2"], 1, Hp) for p in conv_params]).astype(f32)

    # BatchNorm (eval) precomputed affine; padded lanes get shift == 0 so they
    # stay exactly zero through every layer.
    scales, shifts = [], []
    for p in conv_params:
        s = p["bn_gamma"] * jax.lax.rsqrt(p["bn_var"] + 1e-5)
        scales.append(pad2(s, 1, Hp))
        shifts.append(pad2(p["bn_beta"] - p["bn_mean"] * s, 1, Hp))
    scales = jnp.stack(scales).astype(f32)
    shifts = jnp.stack(shifts).astype(f32)

    pool_p = pad2(pool.astype(f32), Gp, Np).astype(bf16)
    wl1 = pad2(lin1["w"], Hp, Hp).astype(bf16)
    bl1 = pad2(lin1["b"], 1, Hp).astype(f32)
    wl2 = pad2(lin2["w"], Hp, Cp).astype(bf16)
    bl2 = pad2(lin2["b"], 1, Cp, fill=-1e30).astype(f32)  # mask padded classes

    vmem = pl.BlockSpec(memory_space=pltpu.MemorySpace.VMEM)
    out_p = pl.pallas_call(
        functools.partial(gin_fused_kernel, num_layers=L),
        out_shape=jax.ShapeDtypeStruct((Gp, Cp), f32),   # lane-dense output
        in_specs=[vmem] * 13,
        out_specs=vmem,
    )(adj_sl, x_p, w1s, b1s, w2s, b2s, scales, shifts,
      pool_p, wl1, bl1, wl2, bl2)
    return out_p[:G, :C]


# ----------------------------------------------------------------------------
# Deterministic parameter construction (shapes follow the PyTorch __init__)
# ----------------------------------------------------------------------------
def init_linear(key, fan_in, fan_out):
    kw, kb = jax.random.split(key)
    bound = 1.0 / jnp.sqrt(jnp.asarray(fan_in, jnp.float32))
    w = jax.random.uniform(kw, (fan_in, fan_out), jnp.float32, -bound, bound)
    b = jax.random.uniform(kb, (1, fan_out), jnp.float32, -bound, bound)
    return w, b


def init_gin_layer(key, in_dim, hidden):
    k1, k2 = jax.random.split(key)
    w1, b1 = init_linear(k1, in_dim, hidden)
    w2, b2 = init_linear(k2, hidden, hidden)
    return {
        "w1": w1, "b1": b1, "w2": w2, "b2": b2,
        "bn_gamma": jnp.ones((1, hidden), jnp.float32),
        "bn_beta": jnp.zeros((1, hidden), jnp.float32),
        "bn_mean": jnp.zeros((1, hidden), jnp.float32),
        "bn_var": jnp.ones((1, hidden), jnp.float32),
    }


if __name__ == "__main__":
    # Small synthetic "dataset": 2 graphs, 8 nodes each, 8 input features,
    # hidden=32, num_classes=2, num_layers=3 (conv1 + 2 extra convs).
    N, F, H, C, G = 16, 8, 32, 2, 2
    num_layers = 3
    E_per_graph = 20

    key = jax.random.PRNGKey(0)
    kx, ks0, kd0, ks1, kd1, kp = jax.random.split(key, 6)

    x = jax.random.normal(kx, (N, F), jnp.float32)

    # Edges kept within each graph (nodes 0..7 = graph 0, 8..15 = graph 1).
    src = jnp.concatenate([jax.random.randint(ks0, (E_per_graph,), 0, 8),
                           jax.random.randint(ks1, (E_per_graph,), 8, 16)])
    dst = jnp.concatenate([jax.random.randint(kd0, (E_per_graph,), 0, 8),
                           jax.random.randint(kd1, (E_per_graph,), 8, 16)])
    edge_index = jnp.stack([src, dst])                     # [2, E]
    batch = jnp.concatenate([jnp.zeros(8, jnp.int32),
                             jnp.ones(8, jnp.int32)])      # [N]

    # Dense adjacency for message passing: A[dst, src] += 1  (sum aggregation).
    adj = jnp.zeros((N, N), jnp.float32).at[edge_index[1], edge_index[0]].add(1.0)

    # Mean-pool matrix P[g, i] = 1/|V_g| if batch[i] == g.
    onehot = (batch[None, :] == jnp.arange(G)[:, None]).astype(jnp.float32)  # [G, N]
    pool = onehot / jnp.maximum(onehot.sum(axis=1, keepdims=True), 1.0)

    # Parameters.
    pk = jax.random.split(kp, num_layers + 2)
    conv_params = [init_gin_layer(pk[0], F, H)]
    for i in range(num_layers - 1):
        conv_params.append(init_gin_layer(pk[1 + i], H, H))
    w_l1, b_l1 = init_linear(pk[num_layers], H, H)
    w_l2, b_l2 = init_linear(pk[num_layers + 1], H, C)
    lin1 = {"w": w_l1, "b": b_l1}
    lin2 = {"w": w_l2, "b": b_l2}

    out = jax.jit(gin_forward)(x, adj, pool, conv_params, lin1, lin2)
    jax.block_until_ready(out)
    assert out.shape == (G, C), out.shape
    assert bool(jnp.all(jnp.isfinite(out))), "non-finite output"
    print("KERNEL_OK")
</pallas_src>

<mosaic_0001>
module attributes {stable_mosaic.version = 11 : i64} {
  func.func @gin_fused_kernel(%arg0: memref<16x16xbf16, #tpu.memory_space<vmem>>, %arg1: memref<16x128xbf16, #tpu.memory_space<vmem>>, %arg2: memref<3x128x128xbf16, #tpu.memory_space<vmem>>, %arg3: memref<3x1x128xf32, #tpu.memory_space<vmem>>, %arg4: memref<3x128x128xbf16, #tpu.memory_space<vmem>>, %arg5: memref<3x1x128xf32, #tpu.memory_space<vmem>>, %arg6: memref<3x1x128xf32, #tpu.memory_space<vmem>>, %arg7: memref<3x1x128xf32, #tpu.memory_space<vmem>>, %arg8: memref<8x16xbf16, #tpu.memory_space<vmem>>, %arg9: memref<128x128xbf16, #tpu.memory_space<vmem>>, %arg10: memref<1x128xf32, #tpu.memory_space<vmem>>, %arg11: memref<128x128xbf16, #tpu.memory_space<vmem>>, %arg12: memref<1x128xf32, #tpu.memory_space<vmem>>, %arg13: memref<8x128xf32, #tpu.memory_space<vmem>>) attributes {dimension_semantics = [], scalar_prefetch = 0 : i64, scratch_operands = 0 : i64, tpu.core_type = #tpu.core_type<tc>} {
    %c0 = arith.constant 0 : index
    %c0_0 = arith.constant 0 : index
    %0 = vector.load %arg0[%c0, %c0_0] : memref<16x16xbf16, #tpu.memory_space<vmem>>, vector<16x16xbf16>
    %c0_1 = arith.constant 0 : index
    %c0_2 = arith.constant 0 : index
    %1 = vector.load %arg1[%c0_1, %c0_2] : memref<16x128xbf16, #tpu.memory_space<vmem>>, vector<16x128xbf16>
    %cst = arith.constant dense<0.000000e+00> : vector<16x128xf32>
    %2 = tpu.matmul %0, %1, %cst {dimension_numbers = #tpu.dot_dimension_numbers<[1], [0], [0], [1], [0, 0, 1, 1], [], []>} : vector<16x16xbf16>, vector<16x128xbf16>, vector<16x128xf32> -> vector<16x128xf32>
    %3 = arith.truncf %2 : vector<16x128xf32> to vector<16x128xbf16>
    %c0_3 = arith.constant 0 : index
    %c0_4 = arith.constant 0 : index
    %c0_5 = arith.constant 0 : index
    %4 = vector.load %arg2[%c0_3, %c0_4, %c0_5] : memref<3x128x128xbf16, #tpu.memory_space<vmem>>, vector<1x128x128xbf16>
    %5 = vector.shape_cast %4 : vector<1x128x128xbf16> to vector<128x128xbf16>
    %cst_6 = arith.constant dense<0.000000e+00> : vector<16x128xf32>
    %6 = tpu.matmul %3, %5, %cst_6 {dimension_numbers = #tpu.dot_dimension_numbers<[1], [0], [0], [1], [0, 0, 1, 1], [], []>} : vector<16x128xbf16>, vector<128x128xbf16>, vector<16x128xf32> -> vector<16x128xf32>
    %c0_7 = arith.constant 0 : index
    %c0_8 = arith.constant 0 : index
    %c0_9 = arith.constant 0 : index
    %7 = vector.load %arg3[%c0_7, %c0_8, %c0_9] : memref<3x1x128xf32, #tpu.memory_space<vmem>>, vector<1x1x128xf32>
    %8 = vector.shape_cast %7 : vector<1x1x128xf32> to vector<1x128xf32>
    %9 = vector.broadcast %8 : vector<1x128xf32> to vector<16x128xf32>
    %10 = arith.addf %6, %9 : vector<16x128xf32>
    %cst_10 = arith.constant 0.000000e+00 : f32
    %11 = vector.broadcast %cst_10 : f32 to vector<16x128xf32>
    %12 = arith.maximumf %10, %11 : vector<16x128xf32>
    %13 = arith.truncf %12 : vector<16x128xf32> to vector<16x128xbf16>
    %c0_11 = arith.constant 0 : index
    %c0_12 = arith.constant 0 : index
    %c0_13 = arith.constant 0 : index
    %14 = vector.load %arg4[%c0_11, %c0_12, %c0_13] : memref<3x128x128xbf16, #tpu.memory_space<vmem>>, vector<1x128x128xbf16>
    %15 = vector.shape_cast %14 : vector<1x128x128xbf16> to vector<128x128xbf16>
    %cst_14 = arith.constant dense<0.000000e+00> : vector<16x128xf32>
    %16 = tpu.matmul %13, %15, %cst_14 {dimension_numbers = #tpu.dot_dimension_numbers<[1], [0], [0], [1], [0, 0, 1, 1], [], []>} : vector<16x128xbf16>, vector<128x128xbf16>, vector<16x128xf32> -> vector<16x128xf32>
    %c0_15 = arith.constant 0 : index
    %c0_16 = arith.constant 0 : index
    %c0_17 = arith.constant 0 : index
    %17 = vector.load %arg5[%c0_15, %c0_16, %c0_17] : memref<3x1x128xf32, #tpu.memory_space<vmem>>, vector<1x1x128xf32>
    %18 = vector.shape_cast %17 : vector<1x1x128xf32> to vector<1x128xf32>
    %19 = vector.broadcast %18 : vector<1x128xf32> to vector<16x128xf32>
    %20 = arith.addf %16, %19 : vector<16x128xf32>
    %cst_18 = arith.constant 0.000000e+00 : f32
    %21 = vector.broadcast %cst_18 : f32 to vector<16x128xf32>
    %22 = arith.maximumf %20, %21 : vector<16x128xf32>
    %c0_19 = arith.constant 0 : index
    %c0_20 = arith.constant 0 : index
    %c0_21 = arith.constant 0 : index
    %23 = vector.load %arg6[%c0_19, %c0_20, %c0_21] : memref<3x1x128xf32, #tpu.memory_space<vmem>>, vector<1x1x128xf32>
    %24 = vector.shape_cast %23 : vector<1x1x128xf32> to vector<1x128xf32>
    %25 = vector.broadcast %24 : vector<1x128xf32> to vector<16x128xf32>
    %26 = arith.mulf %22, %25 : vector<16x128xf32>
    %c0_22 = arith.constant 0 : index
    %c0_23 = arith.constant 0 : index
    %c0_24 = arith.constant 0 : index
    %27 = vector.load %arg7[%c0_22, %c0_23, %c0_24] : memref<3x1x128xf32, #tpu.memory_space<vmem>>, vector<1x1x128xf32>
    %28 = vector.shape_cast %27 : vector<1x1x128xf32> to vector<1x128xf32>
    %29 = vector.broadcast %28 : vector<1x128xf32> to vector<16x128xf32>
    %30 = arith.addf %26, %29 : vector<16x128xf32>
    %31 = arith.truncf %30 : vector<16x128xf32> to vector<16x128xbf16>
    %cst_25 = arith.constant dense<0.000000e+00> : vector<16x128xf32>
    %32 = tpu.matmul %0, %31, %cst_25 {dimension_numbers = #tpu.dot_dimension_numbers<[1], [0], [0], [1], [0, 0, 1, 1], [], []>} : vector<16x16xbf16>, vector<16x128xbf16>, vector<16x128xf32> -> vector<16x128xf32>
    %33 = arith.truncf %32 : vector<16x128xf32> to vector<16x128xbf16>
    %c1 = arith.constant 1 : index
    %c0_26 = arith.constant 0 : index
    %c0_27 = arith.constant 0 : index
    %34 = vector.load %arg2[%c1, %c0_26, %c0_27] : memref<3x128x128xbf16, #tpu.memory_space<vmem>>, vector<1x128x128xbf16>
    %35 = vector.shape_cast %34 : vector<1x128x128xbf16> to vector<128x128xbf16>
    %cst_28 = arith.constant dense<0.000000e+00> : vector<16x128xf32>
    %36 = tpu.matmul %33, %35, %cst_28 {dimension_numbers = #tpu.dot_dimension_numbers<[1], [0], [0], [1], [0, 0, 1, 1], [], []>} : vector<16x128xbf16>, vector<128x128xbf16>, vector<16x128xf32> -> vector<16x128xf32>
    %c1_29 = arith.constant 1 : index
    %c0_30 = arith.constant 0 : index
    %c0_31 = arith.constant 0 : index
    %37 = vector.load %arg3[%c1_29, %c0_30, %c0_31] : memref<3x1x128xf32, #tpu.memory_space<vmem>>, vector<1x1x128xf32>
    %38 = vector.shape_cast %37 : vector<1x1x128xf32> to vector<1x128xf32>
    %39 = vector.broadcast %38 : vector<1x128xf32> to vector<16x128xf32>
    %40 = arith.addf %36, %39 : vector<16x128xf32>
    %cst_32 = arith.constant 0.000000e+00 : f32
    %41 = vector.broadcast %cst_32 : f32 to vector<16x128xf32>
    %42 = arith.maximumf %40, %41 : vector<16x128xf32>
    %43 = arith.truncf %42 : vector<16x128xf32> to vector<16x128xbf16>
    %c1_33 = arith.constant 1 : index
    %c0_34 = arith.constant 0 : index
    %c0_35 = arith.constant 0 : index
    %44 = vector.load %arg4[%c1_33, %c0_34, %c0_35] : memref<3x128x128xbf16, #tpu.memory_space<vmem>>, vector<1x128x128xbf16>
    %45 = vector.shape_cast %44 : vector<1x128x128xbf16> to vector<128x128xbf16>
    %cst_36 = arith.constant dense<0.000000e+00> : vector<16x128xf32>
    %46 = tpu.matmul %43, %45, %cst_36 {dimension_numbers = #tpu.dot_dimension_numbers<[1], [0], [0], [1], [0, 0, 1, 1], [], []>} : vector<16x128xbf16>, vector<128x128xbf16>, vector<16x128xf32> -> vector<16x128xf32>
    %c1_37 = arith.constant 1 : index
    %c0_38 = arith.constant 0 : index
    %c0_39 = arith.constant 0 : index
    %47 = vector.load %arg5[%c1_37, %c0_38, %c0_39] : memref<3x1x128xf32, #tpu.memory_space<vmem>>, vector<1x1x128xf32>
    %48 = vector.shape_cast %47 : vector<1x1x128xf32> to vector<1x128xf32>
    %49 = vector.broadcast %48 : vector<1x128xf32> to vector<16x128xf32>
    %50 = arith.addf %46, %49 : vector<16x128xf32>
    %cst_40 = arith.constant 0.000000e+00 : f32
    %51 = vector.broadcast %cst_40 : f32 to vector<16x128xf32>
    %52 = arith.maximumf %50, %51 : vector<16x128xf32>
    %c1_41 = arith.constant 1 : index
    %c0_42 = arith.constant 0 : index
    %c0_43 = arith.constant 0 : index
    %53 = vector.load %arg6[%c1_41, %c0_42, %c0_43] : memref<3x1x128xf32, #tpu.memory_space<vmem>>, vector<1x1x128xf32>
    %54 = vector.shape_cast %53 : vector<1x1x128xf32> to vector<1x128xf32>
    %55 = vector.broadcast %54 : vector<1x128xf32> to vector<16x128xf32>
    %56 = arith.mulf %52, %55 : vector<16x128xf32>
    %c1_44 = arith.constant 1 : index
    %c0_45 = arith.constant 0 : index
    %c0_46 = arith.constant 0 : index
    %57 = vector.load %arg7[%c1_44, %c0_45, %c0_46] : memref<3x1x128xf32, #tpu.memory_space<vmem>>, vector<1x1x128xf32>
    %58 = vector.shape_cast %57 : vector<1x1x128xf32> to vector<1x128xf32>
    %59 = vector.broadcast %58 : vector<1x128xf32> to vector<16x128xf32>
    %60 = arith.addf %56, %59 : vector<16x128xf32>
    %61 = arith.truncf %60 : vector<16x128xf32> to vector<16x128xbf16>
    %cst_47 = arith.constant dense<0.000000e+00> : vector<16x128xf32>
    %62 = tpu.matmul %0, %61, %cst_47 {dimension_numbers = #tpu.dot_dimension_numbers<[1], [0], [0], [1], [0, 0, 1, 1], [], []>} : vector<16x16xbf16>, vector<16x128xbf16>, vector<16x128xf32> -> vector<16x128xf32>
    %63 = arith.truncf %62 : vector<16x128xf32> to vector<16x128xbf16>
    %c2 = arith.constant 2 : index
    %c0_48 = arith.constant 0 : index
    %c0_49 = arith.constant 0 : index
    %64 = vector.load %arg2[%c2, %c0_48, %c0_49] : memref<3x128x128xbf16, #tpu.memory_space<vmem>>, vector<1x128x128xbf16>
    %65 = vector.shape_cast %64 : vector<1x128x128xbf16> to vector<128x128xbf16>
    %cst_50 = arith.constant dense<0.000000e+00> : vector<16x128xf32>
    %66 = tpu.matmul %63, %65, %cst_50 {dimension_numbers = #tpu.dot_dimension_numbers<[1], [0], [0], [1], [0, 0, 1, 1], [], []>} : vector<16x128xbf16>, vector<128x128xbf16>, vector<16x128xf32> -> vector<16x128xf32>
    %c2_51 = arith.constant 2 : index
    %c0_52 = arith.constant 0 : index
    %c0_53 = arith.constant 0 : index
    %67 = vector.load %arg3[%c2_51, %c0_52, %c0_53] : memref<3x1x128xf32, #tpu.memory_space<vmem>>, vector<1x1x128xf32>
    %68 = vector.shape_cast %67 : vector<1x1x128xf32> to vector<1x128xf32>
    %69 = vector.broadcast %68 : vector<1x128xf32> to vector<16x128xf32>
    %70 = arith.addf %66, %69 : vector<16x128xf32>
    %cst_54 = arith.constant 0.000000e+00 : f32
    %71 = vector.broadcast %cst_54 : f32 to vector<16x128xf32>
    %72 = arith.maximumf %70, %71 : vector<16x128xf32>
    %73 = arith.truncf %72 : vector<16x128xf32> to vector<16x128xbf16>
    %c2_55 = arith.constant 2 : index
    %c0_56 = arith.constant 0 : index
    %c0_57 = arith.constant 0 : index
    %74 = vector.load %arg4[%c2_55, %c0_56, %c0_57] : memref<3x128x128xbf16, #tpu.memory_space<vmem>>, vector<1x128x128xbf16>
    %75 = vector.shape_cast %74 : vector<1x128x128xbf16> to vector<128x128xbf16>
    %cst_58 = arith.constant dense<0.000000e+00> : vector<16x128xf32>
    %76 = tpu.matmul %73, %75, %cst_58 {dimension_numbers = #tpu.dot_dimension_numbers<[1], [0], [0], [1], [0, 0, 1, 1], [], []>} : vector<16x128xbf16>, vector<128x128xbf16>, vector<16x128xf32> -> vector<16x128xf32>
    %c2_59 = arith.constant 2 : index
    %c0_60 = arith.constant 0 : index
    %c0_61 = arith.constant 0 : index
    %77 = vector.load %arg5[%c2_59, %c0_60, %c0_61] : memref<3x1x128xf32, #tpu.memory_space<vmem>>, vector<1x1x128xf32>
    %78 = vector.shape_cast %77 : vector<1x1x128xf32> to vector<1x128xf32>
    %79 = vector.broadcast %78 : vector<1x128xf32> to vector<16x128xf32>
    %80 = arith.addf %76, %79 : vector<16x128xf32>
    %cst_62 = arith.constant 0.000000e+00 : f32
    %81 = vector.broadcast %cst_62 : f32 to vector<16x128xf32>
    %82 = arith.maximumf %80, %81 : vector<16x128xf32>
    %c2_63 = arith.constant 2 : index
    %c0_64 = arith.constant 0 : index
    %c0_65 = arith.constant 0 : index
    %83 = vector.load %arg6[%c2_63, %c0_64, %c0_65] : memref<3x1x128xf32, #tpu.memory_space<vmem>>, vector<1x1x128xf32>
    %84 = vector.shape_cast %83 : vector<1x1x128xf32> to vector<1x128xf32>
    %85 = vector.broadcast %84 : vector<1x128xf32> to vector<16x128xf32>
    %86 = arith.mulf %82, %85 : vector<16x128xf32>
    %c2_66 = arith.constant 2 : index
    %c0_67 = arith.constant 0 : index
    %c0_68 = arith.constant 0 : index
    %87 = vector.load %arg7[%c2_66, %c0_67, %c0_68] : memref<3x1x128xf32, #tpu.memory_space<vmem>>, vector<1x1x128xf32>
    %88 = vector.shape_cast %87 : vector<1x1x128xf32> to vector<1x128xf32>
    %89 = vector.broadcast %88 : vector<1x128xf32> to vector<16x128xf32>
    %90 = arith.addf %86, %89 : vector<16x128xf32>
    %91 = arith.truncf %90 : vector<16x128xf32> to vector<16x128xbf16>
    %c0_69 = arith.constant 0 : index
    %c0_70 = arith.constant 0 : index
    %92 = vector.load %arg8[%c0_69, %c0_70] : memref<8x16xbf16, #tpu.memory_space<vmem>>, vector<8x16xbf16>
    %cst_71 = arith.constant dense<0.000000e+00> : vector<8x128xf32>
    %93 = tpu.matmul %92, %91, %cst_71 {dimension_numbers = #tpu.dot_dimension_numbers<[1], [0], [0], [1], [0, 0, 1, 1], [], []>} : vector<8x16xbf16>, vector<16x128xbf16>, vector<8x128xf32> -> vector<8x128xf32>
    %94 = arith.truncf %93 : vector<8x128xf32> to vector<8x128xbf16>
    %c0_72 = arith.constant 0 : index
    %c0_73 = arith.constant 0 : index
    %95 = vector.load %arg9[%c0_72, %c0_73] : memref<128x128xbf16, #tpu.memory_space<vmem>>, vector<128x128xbf16>
    %cst_74 = arith.constant dense<0.000000e+00> : vector<8x128xf32>
    %96 = tpu.matmul %94, %95, %cst_74 {dimension_numbers = #tpu.dot_dimension_numbers<[1], [0], [0], [1], [0, 0, 1, 1], [], []>} : vector<8x128xbf16>, vector<128x128xbf16>, vector<8x128xf32> -> vector<8x128xf32>
    %c0_75 = arith.constant 0 : index
    %c0_76 = arith.constant 0 : index
    %97 = vector.load %arg10[%c0_75, %c0_76] : memref<1x128xf32, #tpu.memory_space<vmem>>, vector<1x128xf32>
    %98 = vector.broadcast %97 : vector<1x128xf32> to vector<8x128xf32>
    %99 = arith.addf %96, %98 : vector<8x128xf32>
    %cst_77 = arith.constant 0.000000e+00 : f32
    %100 = vector.broadcast %cst_77 : f32 to vector<8x128xf32>
    %101 = arith.maximumf %99, %100 : vector<8x128xf32>
    %102 = arith.truncf %101 : vector<8x128xf32> to vector<8x128xbf16>
    %c0_78 = arith.constant 0 : index
    %c0_79 = arith.constant 0 : index
    %103 = vector.load %arg11[%c0_78, %c0_79] : memref<128x128xbf16, #tpu.memory_space<vmem>>, vector<128x128xbf16>
    %cst_80 = arith.constant dense<0.000000e+00> : vector<8x128xf32>
    %104 = tpu.matmul %102, %103, %cst_80 {dimension_numbers = #tpu.dot_dimension_numbers<[1], [0], [0], [1], [0, 0, 1, 1], [], []>} : vector<8x128xbf16>, vector<128x128xbf16>, vector<8x128xf32> -> vector<8x128xf32>
    %c0_81 = arith.constant 0 : index
    %c0_82 = arith.constant 0 : index
    %105 = vector.load %arg12[%c0_81, %c0_82] : memref<1x128xf32, #tpu.memory_space<vmem>>, vector<1x128xf32>
    %106 = vector.broadcast %105 : vector<1x128xf32> to vector<8x128xf32>
    %107 = arith.addf %104, %106 : vector<8x128xf32>
    %cst_83 = arith.constant dense<0xFF800000> : vector<8xf32>
    %108 = vector.multi_reduction <maximumf>, %107, %cst_83 [1] : vector<8x128xf32> to vector<8xf32>
    %109 = vector.shape_cast %108 : vector<8xf32> to vector<8x1xf32>
    %110 = vector.broadcast %109 : vector<8x1xf32> to vector<8x128xf32>
    %111 = arith.subf %107, %110 : vector<8x128xf32>
    %112 = math.exp %111 : vector<8x128xf32>
    %cst_84 = arith.constant dense<0.000000e+00> : vector<8xf32>
    %113 = vector.multi_reduction <add>, %112, %cst_84 [1] : vector<8x128xf32> to vector<8xf32>
    %114 = vector.shape_cast %113 : vector<8xf32> to vector<8x1xf32>
    %115 = math.log %114 : vector<8x1xf32>
    %116 = vector.broadcast %115 : vector<8x1xf32> to vector<8x128xf32>
    %117 = arith.subf %111, %116 : vector<8x128xf32>
    %c0_85 = arith.constant 0 : index
    %c0_86 = arith.constant 0 : index
    %118 = vector.load %arg13[%c0_85, %c0_86] : memref<8x128xf32, #tpu.memory_space<vmem>>, vector<8x128xf32>
    tpu.vector_store %arg13[%c0_85, %c0_86], %117 {strides = array<i32>} : memref<8x128xf32, #tpu.memory_space<vmem>>, vector<8x128xf32>,
    return
  }
}

</mosaic_0001>

<llo_original>
// kernel: gin_forward.1
$region0: #{gin_forward.1}
  #allocation0 [shape = 'u32[]', space=smem, size = 0x4, offset = 0x4, fixed_abs, tag = 'smem constant byte address 0x4 - core index']
  #allocation1 [shape = 'u32[144,128]{1,0:T(1,128)}', space=vmem, size = 0x12000, scoped, tag = 'internal scratch']
  %s0 = inlined_call_operand.vmem [shape: bf16[16,16], index: 0, kind: input, shape index: {}]
  %s1 = inlined_call_operand.vmem [shape: bf16[16,128], index: 1, kind: input, shape index: {}]
  %s2 = inlined_call_operand.vmem [shape: bf16[3,128,128], index: 2, kind: input, shape index: {}]
  %s3 = inlined_call_operand.vmem [shape: f32[3,1,128], index: 3, kind: input, shape index: {}]
  %s4 = inlined_call_operand.vmem [shape: bf16[3,128,128], index: 4, kind: input, shape index: {}]
  %s5 = inlined_call_operand.vmem [shape: f32[3,1,128], index: 5, kind: input, shape index: {}]
  %s6 = inlined_call_operand.vmem [shape: f32[3,1,128], index: 6, kind: input, shape index: {}]
  %s7 = inlined_call_operand.vmem [shape: f32[3,1,128], index: 7, kind: input, shape index: {}]
  %s8 = inlined_call_operand.vmem [shape: bf16[8,16], index: 8, kind: input, shape index: {}]
  %s9 = inlined_call_operand.vmem [shape: bf16[128,128], index: 9, kind: input, shape index: {}]
  %s10 = inlined_call_operand.vmem [shape: f32[1,128], index: 10, kind: input, shape index: {}]
  %s11 = inlined_call_operand.vmem [shape: bf16[128,128], index: 11, kind: input, shape index: {}]
  %s12 = inlined_call_operand.vmem [shape: f32[1,128], index: 12, kind: input, shape index: {}]
  %s13 = inlined_call_operand.vmem [shape: f32[8,128], index: 13, kind: output, shape index: {}]
  %s14 = sld [smem:[#allocation0]]
  $region62: #{gin_forward.1} parent=0
    _
  %s16 = ssub.s32 1, %s14
  %s17 = scalar_select 0, %s16, %s14
  // Predicated region
  $region2: #{gin_forward.1} parent=0 // pred_check
    _
  $region3: #{gin_forward.1} parent=0 // pred_check_branch
    %19 = sbr.rel (0) target = $region5
  $region4: #{gin_forward.1} parent=0 // pred_region
    _
  $region5: #{gin_forward.1} parent=0 // pred_fallthru
    _
  // Predicated region
  $region6: #{gin_forward.1} parent=0 // pred_check
    _
  $region7: #{gin_forward.1} parent=0 // pred_check_branch
    %21 = sbr.rel (0) target = $region9
  $region8: #{gin_forward.1} parent=0 // pred_region
    _
  $region9: #{gin_forward.1} parent=0 // pred_fallthru
    _
  // Predicated region
  $region10: #{gin_forward.1} parent=0 // pred_check
    _
  $region11: #{gin_forward.1} parent=0 // pred_check_branch
    %23 = sbr.rel (0) target = $region13
  $region12: #{gin_forward.1} parent=0 // pred_region
    _
  $region13: #{gin_forward.1} parent=0 // pred_fallthru
    _
  // Predicated region
  $region14: #{gin_forward.1} parent=0 // pred_check
    _
  $region15: #{gin_forward.1} parent=0 // pred_check_branch
    %25 = sbr.rel (0) target = $region17
  $region16: #{gin_forward.1} parent=0 // pred_region
    _
  $region17: #{gin_forward.1} parent=0 // pred_fallthru
    _
  // Predicated region
  $region18: #{gin_forward.1} parent=0 // pred_check
    _
  $region19: #{gin_forward.1} parent=0 // pred_check_branch
    %27 = sbr.rel (0) target = $region21
  $region20: #{gin_forward.1} parent=0 // pred_region
    _
  $region21: #{gin_forward.1} parent=0 // pred_fallthru
    _
  // Predicated region
  $region22: #{gin_forward.1} parent=0 // pred_check
    _
  $region23: #{gin_forward.1} parent=0 // pred_check_branch
    %29 = sbr.rel (0) target = $region25
  $region24: #{gin_forward.1} parent=0 // pred_region
    _
  $region25: #{gin_forward.1} parent=0 // pred_fallthru
    _
  // Predicated region
  $region26: #{gin_forward.1} parent=0 // pred_check
    _
  $region27: #{gin_forward.1} parent=0 // pred_check_branch
    %31 = sbr.rel (0) target = $region29
  $region28: #{gin_forward.1} parent=0 // pred_region
    _
  $region29: #{gin_forward.1} parent=0 // pred_fallthru
    _
  // Predicated region
  $region30: #{gin_forward.1} parent=0 // pred_check
    _
  $region31: #{gin_forward.1} parent=0 // pred_check_branch
    %33 = sbr.rel (0) target = $region33
  $region32: #{gin_forward.1} parent=0 // pred_region
    _
  $region33: #{gin_forward.1} parent=0 // pred_fallthru
    _
  // Predicated region
  $region34: #{gin_forward.1} parent=0 // pred_check
    _
  $region35: #{gin_forward.1} parent=0 // pred_check_branch
    %35 = sbr.rel (0) target = $region37
  $region36: #{gin_forward.1} parent=0 // pred_region
    _
  $region37: #{gin_forward.1} parent=0 // pred_fallthru
    _
  // Predicated region
  $region38: #{gin_forward.1} parent=0 // pred_check
    _
  $region39: #{gin_forward.1} parent=0 // pred_check_branch
    %37 = sbr.rel (0) target = $region41
  $region40: #{gin_forward.1} parent=0 // pred_region
    _
  $region41: #{gin_forward.1} parent=0 // pred_fallthru
    _
  // Predicated region
  $region42: #{gin_forward.1} parent=0 // pred_check
    _
  $region43: #{gin_forward.1} parent=0 // pred_check_branch
    %39 = sbr.rel (0) target = $region45
  $region44: #{gin_forward.1} parent=0 // pred_region
    _
  $region45: #{gin_forward.1} parent=0 // pred_fallthru
    _
  // Predicated region
  $region46: #{gin_forward.1} parent=0 // pred_check
    _
  $region47: #{gin_forward.1} parent=0 // pred_check_branch
    %41 = sbr.rel (0) target = $region49
  $region48: #{gin_forward.1} parent=0 // pred_region
    _
  $region49: #{gin_forward.1} parent=0 // pred_fallthru
    _
  // Predicated region
  $region50: #{gin_forward.1} parent=0 // pred_check
    _
  $region51: #{gin_forward.1} parent=0 // pred_check_branch
    %43 = sbr.rel (0) target = $region53
  $region52: #{gin_forward.1} parent=0 // pred_region
    _
  $region53: #{gin_forward.1} parent=0 // pred_fallthru
    _
  %v45 = vld [vmem:[%s0] sm:$0xf]
  %v46 = vld [vmem:[%s0 + $0x4] sm:$0xf]
  %v47 = vld [vmem:[%s1] sm:$0xf]
  %v48 = vld [vmem:[%s1 + $0x4] sm:$0xf]
  %v51 = vunpack.c.l.b16 %v45
  %v52 = vunpack.c.l.b16 %v46
  %v53 = vpack.c.b16 %v52, %v51
  %v56 = vunpack.c.l.b16 %v47
  %v57 = vunpack.c.l.b16 %v48
  %v58 = vpack.c.b16 %v57, %v56
  %vm60 = vcmask 130048
  %v62 = vsel %vm60, %v53, 0
  %64 = vmatprep.subr.bf16.mxu0 0
  %65 = vmatpush1.bf16.msra.mxu0 0
  %66 = vmatprep.subr.bf16.mxu0 0
  %67 = vmatpush1.bf16.msra.mxu0 0
  %68 = vmatprep.subr.bf16.mxu0 0
  %69 = vmatpush1.bf16.msra.mxu0 0
  %70 = vmatprep.subr.bf16.mxu0 0
  %71 = vmatpush1.bf16.msra.mxu0 0
  %72 = vmatprep.subr.bf16.mxu0 0
  %73 = vmatpush1.bf16.msra.mxu0 0
  %74 = vmatprep.subr.bf16.mxu0 0
  %75 = vmatpush1.bf16.msra.mxu0 0
  %76 = vmatprep.subr.bf16.mxu0 0
  %77 = vmatpush1.bf16.msra.mxu0 0
  %78 = vmatprep.subr.bf16.mxu0 0
  %79 = vmatpush1.bf16.msra.mxu0 %v58
  %80 = vmatprep.subr.bf16.mxu0 0
  %81 = vmatpush2.bf16.msra.mxu0 0
  %82 = vmatprep.subr.bf16.mxu0 0
  %83 = vmatpush2.bf16.msra.mxu0 0
  %84 = vmatprep.subr.bf16.mxu0 0
  %85 = vmatpush2.bf16.msra.mxu0 0
  %86 = vmatprep.subr.bf16.mxu0 0
  %87 = vmatpush2.bf16.msra.mxu0 0
  %88 = vmatprep.subr.bf16.mxu0 0
  %89 = vmatpush2.bf16.msra.mxu0 0
  %90 = vmatprep.subr.bf16.mxu0 0
  %91 = vmatpush2.bf16.msra.mxu0 0
  %92 = vmatprep.subr.bf16.mxu0 0
  %93 = vmatpush2.bf16.msra.mxu0 0
  %94 = vmatprep.subr.bf16.mxu0 0
  %95 = vmatpush2.bf16.msra.mxu0 0
  %96 = vmatprep.mubr.bf16.mxu0 0
  %97 = vmatmul.mubr.bf16.gmra.mxu0 %v62
  %v98 = vpop.f32.mrf.mxu0
  %v99 = vadd.f32 0.0, %v98
  %v100 = vpop.f32.mrf.mxu0
  %v101 = vpop.f32.mrf.mxu0
  %v102 = vadd.f32 0.0, %v101
  %v103 = vpop.f32.mrf.mxu0
  %104 = vdwg.mxu0
  %v105 = vpack.c.bf16 %v102, %v99
  %v106 = vld [vmem:[%s2] sm:$0xf]
  %v107 = vld [vmem:[%s2 + $0x4] sm:$0xf]
  %v108 = vld [vmem:[%s2 + $0x8] sm:$0xf]
  %v109 = vld [vmem:[%s2 + $0xc] sm:$0xf]
  %v110 = vld [vmem:[%s2 + $0x10] sm:$0xf]
  %v111 = vld [vmem:[%s2 + $0x14] sm:$0xf]
  %v112 = vld [vmem:[%s2 + $0x18] sm:$0xf]
  %v113 = vld [vmem:[%s2 + $0x1c] sm:$0xf]
  %v114 = vld [vmem:[%s2 + $0x20] sm:$0xf]
  %v115 = vld [vmem:[%s2 + $0x24] sm:$0xf]
  %v116 = vld [vmem:[%s2 + $0x28] sm:$0xf]
  %v117 = vld [vmem:[%s2 + $0x2c] sm:$0xf]
  %v118 = vld [vmem:[%s2 + $0x30] sm:$0xf]
  %v119 = vld [vmem:[%s2 + $0x34] sm:$0xf]
  %v120 = vld [vmem:[%s2 + $0x38] sm:$0xf]
  %v121 = vld [vmem:[%s2 + $0x3c] sm:$0xf]
  %v122 = vld [vmem:[%s3] sm:$0x1]
  %v124 = vlaneseq
  %v125 = vshrl.u32 %v124, 7
  %v126 = vsub.s32 0, %v125
  %v127 = vrot.slane %v122, %v126
  %v145 = vunpack.c.l.b16 %v106
  %v146 = vunpack.c.l.b16 %v107
  %v147 = vunpack.c.l.b16 %v108
  %v148 = vunpack.c.l.b16 %v109
  %v149 = vunpack.c.l.b16 %v110
  %v150 = vunpack.c.l.b16 %v111
  %v151 = vunpack.c.l.b16 %v112
  %v152 = vunpack.c.l.b16 %v113
  %v153 = vunpack.c.l.b16 %v114
  %v154 = vunpack.c.l.b16 %v115
  %v155 = vunpack.c.l.b16 %v116
  %v156 = vunpack.c.l.b16 %v117
  %v157 = vunpack.c.l.b16 %v118
  %v158 = vunpack.c.l.b16 %v119
  %v159 = vunpack.c.l.b16 %v120
  %v160 = vunpack.c.l.b16 %v121
  %v161 = vpack.c.b16 %v146, %v145
  %v162 = vpack.c.b16 %v148, %v147
  %v163 = vpack.c.b16 %v150, %v149
  %v164 = vpack.c.b16 %v152, %v151
  %v165 = vpack.c.b16 %v154, %v153
  %v166 = vpack.c.b16 %v156, %v155
  %v167 = vpack.c.b16 %v158, %v157
  %v168 = vpack.c.b16 %v160, %v159
  %177 = vmatprep.subr.bf16.mxu0 0
  %178 = vmatpush1.bf16.msra.mxu0 %v168
  %179 = vmatprep.subr.bf16.mxu0 0
  %180 = vmatpush1.bf16.msra.mxu0 %v167
  %181 = vmatprep.subr.bf16.mxu0 0
  %182 = vmatpush1.bf16.msra.mxu0 %v166
  %183 = vmatprep.subr.bf16.mxu0 0
  %184 = vmatpush1.bf16.msra.mxu0 %v165
  %185 = vmatprep.subr.bf16.mxu0 0
  %186 = vmatpush1.bf16.msra.mxu0 %v164
  %187 = vmatprep.subr.bf16.mxu0 0
  %188 = vmatpush1.bf16.msra.mxu0 %v163
  %189 = vmatprep.subr.bf16.mxu0 0
  %190 = vmatpush1.bf16.msra.mxu0 %v162
  %191 = vmatprep.subr.bf16.mxu0 0
  %192 = vmatpush1.bf16.msra.mxu0 %v161
  %193 = vmatprep.subr.bf16.mxu0 0
  %194 = vmatpush2.bf16.msra.mxu0 0
  %195 = vmatprep.subr.bf16.mxu0 0
  %196 = vmatpush2.bf16.msra.mxu0 0
  %197 = vmatprep.subr.bf16.mxu0 0
  %198 = vmatpush2.bf16.msra.mxu0 0
  %199 = vmatprep.subr.bf16.mxu0 0
  %200 = vmatpush2.bf16.msra.mxu0 0
  %201 = vmatprep.subr.bf16.mxu0 0
  %202 = vmatpush2.bf16.msra.mxu0 0
  %203 = vmatprep.subr.bf16.mxu0 0
  %204 = vmatpush2.bf16.msra.mxu0 0
  %205 = vmatprep.subr.bf16.mxu0 0
  %206 = vmatpush2.bf16.msra.mxu0 0
  %207 = vmatprep.subr.bf16.mxu0 0
  %208 = vmatpush2.bf16.msra.mxu0 0
  %209 = vmatprep.mubr.bf16.mxu0 0
  %210 = vmatmul.mubr.bf16.gmra.mxu0 %v105
  %v211 = vpop.f32.mrf.mxu0
  %v212 = vadd.f32 %v127, %v211
  %v213 = vpop.f32.mrf.mxu0
  %v214 = vpop.f32.mrf.mxu0
  %v215 = vadd.f32 %v127, %v214
  %v216 = vpop.f32.mrf.mxu0
  %217 = vdwg.mxu0
  %v218 = vmax.f32 %v212, 0.0
  %v219 = vmax.f32 %v215, 0.0
  %v220 = vpack.c.bf16 %v219, %v218
  %v221 = vld [vmem:[%s4] sm:$0xf]
  %v222 = vld [vmem:[%s4 + $0x4] sm:$0xf]
  %v223 = vld [vmem:[%s4 + $0x8] sm:$0xf]
  %v224 = vld [vmem:[%s4 + $0xc] sm:$0xf]
  %v225 = vld [vmem:[%s4 + $0x10] sm:$0xf]
  %v226 = vld [vmem:[%s4 + $0x14] sm:$0xf]
  %v227 = vld [vmem:[%s4 + $0x18] sm:$0xf]
  %v228 = vld [vmem:[%s4 + $0x1c] sm:$0xf]
  %v229 = vld [vmem:[%s4 + $0x20] sm:$0xf]
  %v230 = vld [vmem:[%s4 + $0x24] sm:$0xf]
  %v231 = vld [vmem:[%s4 + $0x28] sm:$0xf]
  %v232 = vld [vmem:[%s4 + $0x2c] sm:$0xf]
  %v233 = vld [vmem:[%s4 + $0x30] sm:$0xf]
  %v234 = vld [vmem:[%s4 + $0x34] sm:$0xf]
  %v235 = vld [vmem:[%s4 + $0x38] sm:$0xf]
  %v236 = vld [vmem:[%s4 + $0x3c] sm:$0xf]
  %v237 = vld [vmem:[%s5] sm:$0x1]
  %v239 = vlaneseq
  %v240 = vshrl.u32 %v239, 7
  %v241 = vsub.s32 0, %v240
  %v242 = vrot.slane %v237, %v241
  %v260 = vunpack.c.l.b16 %v221
  %v261 = vunpack.c.l.b16 %v222
  %v262 = vunpack.c.l.b16 %v223
  %v263 = vunpack.c.l.b16 %v224
  %v264 = vunpack.c.l.b16 %v225
  %v265 = vunpack.c.l.b16 %v226
  %v266 = vunpack.c.l.b16 %v227
  %v267 = vunpack.c.l.b16 %v228
  %v268 = vunpack.c.l.b16 %v229
  %v269 = vunpack.c.l.b16 %v230
  %v270 = vunpack.c.l.b16 %v231
  %v271 = vunpack.c.l.b16 %v232
  %v272 = vunpack.c.l.b16 %v233
  %v273 = vunpack.c.l.b16 %v234
  %v274 = vunpack.c.l.b16 %v235
  %v275 = vunpack.c.l.b16 %v236
  %v276 = vpack.c.b16 %v261, %v260
  %v277 = vpack.c.b16 %v263, %v262
  %v278 = vpack.c.b16 %v265, %v264
  %v279 = vpack.c.b16 %v267, %v266
  %v280 = vpack.c.b16 %v269, %v268
  %v281 = vpack.c.b16 %v271, %v270
  %v282 = vpack.c.b16 %v273, %v272
  %v283 = vpack.c.b16 %v275, %v274
  %292 = vmatprep.subr.bf16.mxu0 0
  %293 = vmatpush1.bf16.msra.mxu0 %v283
  %294 = vmatprep.subr.bf16.mxu0 0
  %295 = vmatpush1.bf16.msra.mxu0 %v282
  %296 = vmatprep.subr.bf16.mxu0 0
  %297 = vmatpush1.bf16.msra.mxu0 %v281
  %298 = vmatprep.subr.bf16.mxu0 0
  %299 = vmatpush1.bf16.msra.mxu0 %v280
  %300 = vmatprep.subr.bf16.mxu0 0
  %301 = vmatpush1.bf16.msra.mxu0 %v279
  %302 = vmatprep.subr.bf16.mxu0 0
  %303 = vmatpush1.bf16.msra.mxu0 %v278
  %304 = vmatprep.subr.bf16.mxu0 0
  %305 = vmatpush1.bf16.msra.mxu0 %v277
  %306 = vmatprep.subr.bf16.mxu0 0
  %307 = vmatpush1.bf16.msra.mxu0 %v276
  %308 = vmatprep.subr.bf16.mxu0 0
  %309 = vmatpush2.bf16.msra.mxu0 0
  %310 = vmatprep.subr.bf16.mxu0 0
  %311 = vmatpush2.bf16.msra.mxu0 0
  %312 = vmatprep.subr.bf16.mxu0 0
  %313 = vmatpush2.bf16.msra.mxu0 0
  %314 = vmatprep.subr.bf16.mxu0 0
  %315 = vmatpush2.bf16.msra.mxu0 0
  %316 = vmatprep.subr.bf16.mxu0 0
  %317 = vmatpush2.bf16.msra.mxu0 0
  %318 = vmatprep.subr.bf16.mxu0 0
  %319 = vmatpush2.bf16.msra.mxu0 0
  %320 = vmatprep.subr.bf16.mxu0 0
  %321 = vmatpush2.bf16.msra.mxu0 0
  %322 = vmatprep.subr.bf16.mxu0 0
  %323 = vmatpush2.bf16.msra.mxu0 0
  %324 = vmatprep.mubr.bf16.mxu0 0
  %325 = vmatmul.mubr.bf16.gmra.mxu0 %v220
  %v326 = vpop.f32.mrf.mxu0
  %v327 = vadd.f32 %v242, %v326
  %v328 = vpop.f32.mrf.mxu0
  %v329 = vpop.f32.mrf.mxu0
  %v330 = vadd.f32 %v242, %v329
  %v331 = vpop.f32.mrf.mxu0
  %332 = vdwg.mxu0
  %v333 = vmax.f32 %v327, 0.0
  %v334 = vmax.f32 %v330, 0.0
  %v335 = vld [vmem:[%s6] sm:$0x1]
  %v337 = vlaneseq
  %v338 = vshrl.u32 %v337, 7
  %v339 = vsub.s32 0, %v338
  %v340 = vrot.slane %v335, %v339
  %v342 = vmul.f32 %v333, %v340
  %v343 = vmul.f32 %v334, %v340
  %v344 = vld [vmem:[%s7] sm:$0x1]
  %v346 = vlaneseq
  %v347 = vshrl.u32 %v346, 7
  %v348 = vsub.s32 0, %v347
  %v349 = vrot.slane %v344, %v348
  %v351 = vadd.f32 %v342, %v349
  %v352 = vadd.f32 %v343, %v349
  %v353 = vpack.c.bf16 %v352, %v351
  %354 = vmatprep.subr.bf16.mxu0 0
  %355 = vmatpush1.bf16.msra.mxu0 0
  %356 = vmatprep.subr.bf16.mxu0 0
  %357 = vmatpush1.bf16.msra.mxu0 0
  %358 = vmatprep.subr.bf16.mxu0 0
  %359 = vmatpush1.bf16.msra.mxu0 0
  %360 = vmatprep.subr.bf16.mxu0 0
  %361 = vmatpush1.bf16.msra.mxu0 0
  %362 = vmatprep.subr.bf16.mxu0 0
  %363 = vmatpush1.bf16.msra.mxu0 0
  %364 = vmatprep.subr.bf16.mxu0 0
  %365 = vmatpush1.bf16.msra.mxu0 0
  %366 = vmatprep.subr.bf16.mxu0 0
  %367 = vmatpush1.bf16.msra.mxu0 0
  %368 = vmatprep.subr.bf16.mxu0 0
  %369 = vmatpush1.bf16.msra.mxu0 %v353
  %370 = vmatprep.subr.bf16.mxu0 0
  %371 = vmatpush2.bf16.msra.mxu0 0
  %372 = vmatprep.subr.bf16.mxu0 0
  %373 = vmatpush2.bf16.msra.mxu0 0
  %374 = vmatprep.subr.bf16.mxu0 0
  %375 = vmatpush2.bf16.msra.mxu0 0
  %376 = vmatprep.subr.bf16.mxu0 0
  %377 = vmatpush2.bf16.msra.mxu0 0
  %378 = vmatprep.subr.bf16.mxu0 0
  %379 = vmatpush2.bf16.msra.mxu0 0
  %380 = vmatprep.subr.bf16.mxu0 0
  %381 = vmatpush2.bf16.msra.mxu0 0
  %382 = vmatprep.subr.bf16.mxu0 0
  %383 = vmatpush2.bf16.msra.mxu0 0
  %384 = vmatprep.subr.bf16.mxu0 0
  %385 = vmatpush2.bf16.msra.mxu0 0
  %386 = vmatprep.mubr.bf16.mxu0 0
  %387 = vmatmul.mubr.bf16.gmra.mxu0 %v62
  %v388 = vpop.f32.mrf.mxu0
  %v389 = vadd.f32 0.0, %v388
  %v390 = vpop.f32.mrf.mxu0
  %v391 = vpop.f32.mrf.mxu0
  %v392 = vadd.f32 0.0, %v391
  %v393 = vpop.f32.mrf.mxu0
  %394 = vdwg.mxu0
  %v395 = vpack.c.bf16 %v392, %v389
  %s396 = scalar_lea.vmem %s2, 64
  %v397 = vld [vmem:[%s396] sm:$0xf]
  %v398 = vld [vmem:[%s396 + $0x4] sm:$0xf]
  %v399 = vld [vmem:[%s396 + $0x8] sm:$0xf]
  %v400 = vld [vmem:[%s396 + $0xc] sm:$0xf]
  %v401 = vld [vmem:[%s396 + $0x10] sm:$0xf]
  %v402 = vld [vmem:[%s396 + $0x14] sm:$0xf]
  %v403 = vld [vmem:[%s396 + $0x18] sm:$0xf]
  %v404 = vld [vmem:[%s396 + $0x1c] sm:$0xf]
  %v405 = vld [vmem:[%s396 + $0x20] sm:$0xf]
  %v406 = vld [vmem:[%s396 + $0x24] sm:$0xf]
  %v407 = vld [vmem:[%s396 + $0x28] sm:$0xf]
  %v408 = vld [vmem:[%s396 + $0x2c] sm:$0xf]
  %v409 = vld [vmem:[%s396 + $0x30] sm:$0xf]
  %v410 = vld [vmem:[%s396 + $0x34] sm:$0xf]
  %v411 = vld [vmem:[%s396 + $0x38] sm:$0xf]
  %v412 = vld [vmem:[%s396 + $0x3c] sm:$0xf]
  %s413 = scalar_lea.vmem %s3, 1
  %v414 = vld [vmem:[%s413] sm:$0x1]
  %v416 = vlaneseq
  %v417 = vshrl.u32 %v416, 7
  %v418 = vsub.s32 0, %v417
  %v419 = vrot.slane %v414, %v418
  %v437 = vunpack.c.l.b16 %v397
  %v438 = vunpack.c.l.b16 %v398
  %v439 = vunpack.c.l.b16 %v399
  %v440 = vunpack.c.l.b16 %v400
  %v441 = vunpack.c.l.b16 %v401
  %v442 = vunpack.c.l.b16 %v402
  %v443 = vunpack.c.l.b16 %v403
  %v444 = vunpack.c.l.b16 %v404
  %v445 = vunpack.c.l.b16 %v405
  %v446 = vunpack.c.l.b16 %v406
  %v447 = vunpack.c.l.b16 %v407
  %v448 = vunpack.c.l.b16 %v408
  %v449 = vunpack.c.l.b16 %v409
  %v450 = vunpack.c.l.b16 %v410
  %v451 = vunpack.c.l.b16 %v411
  %v452 = vunpack.c.l.b16 %v412
  %v453 = vpack.c.b16 %v438, %v437
  %v454 = vpack.c.b16 %v440, %v439
  %v455 = vpack.c.b16 %v442, %v441
  %v456 = vpack.c.b16 %v444, %v443
  %v457 = vpack.c.b16 %v446, %v445
  %v458 = vpack.c.b16 %v448, %v447
  %v459 = vpack.c.b16 %v450, %v449
  %v460 = vpack.c.b16 %v452, %v451
  %469 = vmatprep.subr.bf16.mxu0 0
  %470 = vmatpush1.bf16.msra.mxu0 %v460
  %471 = vmatprep.subr.bf16.mxu0 0
  %472 = vmatpush1.bf16.msra.mxu0 %v459
  %473 = vmatprep.subr.bf16.mxu0 0
  %474 = vmatpush1.bf16.msra.mxu0 %v458
  %475 = vmatprep.subr.bf16.mxu0 0
  %476 = vmatpush1.bf16.msra.mxu0 %v457
  %477 = vmatprep.subr.bf16.mxu0 0
  %478 = vmatpush1.bf16.msra.mxu0 %v456
  %479 = vmatprep.subr.bf16.mxu0 0
  %480 = vmatpush1.bf16.msra.mxu0 %v455
  %481 = vmatprep.subr.bf16.mxu0 0
  %482 = vmatpush1.bf16.msra.mxu0 %v454
  %483 = vmatprep.subr.bf16.mxu0 0
  %484 = vmatpush1.bf16.msra.mxu0 %v453
  %485 = vmatprep.subr.bf16.mxu0 0
  %486 = vmatpush2.bf16.msra.mxu0 0
  %487 = vmatprep.subr.bf16.mxu0 0
  %488 = vmatpush2.bf16.msra.mxu0 0
  %489 = vmatprep.subr.bf16.mxu0 0
  %490 = vmatpush2.bf16.msra.mxu0 0
  %491 = vmatprep.subr.bf16.mxu0 0
  %492 = vmatpush2.bf16.msra.mxu0 0
  %493 = vmatprep.subr.bf16.mxu0 0
  %494 = vmatpush2.bf16.msra.mxu0 0
  %495 = vmatprep.subr.bf16.mxu0 0
  %496 = vmatpush2.bf16.msra.mxu0 0
  %497 = vmatprep.subr.bf16.mxu0 0
  %498 = vmatpush2.bf16.msra.mxu0 0
  %499 = vmatprep.subr.bf16.mxu0 0
  %500 = vmatpush2.bf16.msra.mxu0 0
  %501 = vmatprep.mubr.bf16.mxu0 0
  %502 = vmatmul.mubr.bf16.gmra.mxu0 %v395
  %v503 = vpop.f32.mrf.mxu0
  %v504 = vadd.f32 %v419, %v503
  %v505 = vpop.f32.mrf.mxu0
  %v506 = vpop.f32.mrf.mxu0
  %v507 = vadd.f32 %v419, %v506
  %v508 = vpop.f32.mrf.mxu0
  %509 = vdwg.mxu0
  %v510 = vmax.f32 %v504, 0.0
  %v511 = vmax.f32 %v507, 0.0
  %v512 = vpack.c.bf16 %v511, %v510
  %s513 = scalar_lea.vmem %s4, 64
  %v514 = vld [vmem:[%s513] sm:$0xf]
  %v515 = vld [vmem:[%s513 + $0x4] sm:$0xf]
  %v516 = vld [vmem:[%s513 + $0x8] sm:$0xf]
  %v517 = vld [vmem:[%s513 + $0xc] sm:$0xf]
  %v518 = vld [vmem:[%s513 + $0x10] sm:$0xf]
  %v519 = vld [vmem:[%s513 + $0x14] sm:$0xf]
  %v520 = vld [vmem:[%s513 + $0x18] sm:$0xf]
  %v521 = vld [vmem:[%s513 + $0x1c] sm:$0xf]
  %v522 = vld [vmem:[%s513 + $0x20] sm:$0xf]
  %v523 = vld [vmem:[%s513 + $0x24] sm:$0xf]
  %v524 = vld [vmem:[%s513 + $0x28] sm:$0xf]
  %v525 = vld [vmem:[%s513 + $0x2c] sm:$0xf]
  %v526 = vld [vmem:[%s513 + $0x30] sm:$0xf]
  %v527 = vld [vmem:[%s513 + $0x34] sm:$0xf]
  %v528 = vld [vmem:[%s513 + $0x38] sm:$0xf]
  %v529 = vld [vmem:[%s513 + $0x3c] sm:$0xf]
  %s530 = scalar_lea.vmem %s5, 1
  %v531 = vld [vmem:[%s530] sm:$0x1]
  %v533 = vlaneseq
  %v534 = vshrl.u32 %v533, 7
  %v535 = vsub.s32 0, %v534
  %v536 = vrot.slane %v531, %v535
  %v554 = vunpack.c.l.b16 %v514
  %v555 = vunpack.c.l.b16 %v515
  %v556 = vunpack.c.l.b16 %v516
  %v557 = vunpack.c.l.b16 %v517
  %v558 = vunpack.c.l.b16 %v518
  %v559 = vunpack.c.l.b16 %v519
  %v560 = vunpack.c.l.b16 %v520
  %v561 = vunpack.c.l.b16 %v521
  %v562 = vunpack.c.l.b16 %v522
  %v563 = vunpack.c.l.b16 %v523
  %v564 = vunpack.c.l.b16 %v524
  %v565 = vunpack.c.l.b16 %v525
  %v566 = vunpack.c.l.b16 %v526
  %v567 = vunpack.c.l.b16 %v527
  %v568 = vunpack.c.l.b16 %v528
  %v569 = vunpack.c.l.b16 %v529
  %v570 = vpack.c.b16 %v555, %v554
  %v571 = vpack.c.b16 %v557, %v556
  %v572 = vpack.c.b16 %v559, %v558
  %v573 = vpack.c.b16 %v561, %v560
  %v574 = vpack.c.b16 %v563, %v562
  %v575 = vpack.c.b16 %v565, %v564
  %v576 = vpack.c.b16 %v567, %v566
  %v577 = vpack.c.b16 %v569, %v568
  %586 = vmatprep.subr.bf16.mxu0 0
  %587 = vmatpush1.bf16.msra.mxu0 %v577
  %588 = vmatprep.subr.bf16.mxu0 0
  %589 = vmatpush1.bf16.msra.mxu0 %v576
  %590 = vmatprep.subr.bf16.mxu0 0
  %591 = vmatpush1.bf16.msra.mxu0 %v575
  %592 = vmatprep.subr.bf16.mxu0 0
  %593 = vmatpush1.bf16.msra.mxu0 %v574
  %594 = vmatprep.subr.bf16.mxu0 0
  %595 = vmatpush1.bf16.msra.mxu0 %v573
  %596 = vmatprep.subr.bf16.mxu0 0
  %597 = vmatpush1.bf16.msra.mxu0 %v572
  %598 = vmatprep.subr.bf16.mxu0 0
  %599 = vmatpush1.bf16.msra.mxu0 %v571
  %600 = vmatprep.subr.bf16.mxu0 0
  %601 = vmatpush1.bf16.msra.mxu0 %v570
  %602 = vmatprep.subr.bf16.mxu0 0
  %603 = vmatpush2.bf16.msra.mxu0 0
  %604 = vmatprep.subr.bf16.mxu0 0
  %605 = vmatpush2.bf16.msra.mxu0 0
  %606 = vmatprep.subr.bf16.mxu0 0
  %607 = vmatpush2.bf16.msra.mxu0 0
  %608 = vmatprep.subr.bf16.mxu0 0
  %609 = vmatpush2.bf16.msra.mxu0 0
  %610 = vmatprep.subr.bf16.mxu0 0
  %611 = vmatpush2.bf16.msra.mxu0 0
  %612 = vmatprep.subr.bf16.mxu0 0
  %613 = vmatpush2.bf16.msra.mxu0 0
  %614 = vmatprep.subr.bf16.mxu0 0
  %615 = vmatpush2.bf16.msra.mxu0 0
  %616 = vmatprep.subr.bf16.mxu0 0
  %617 = vmatpush2.bf16.msra.mxu0 0
  %618 = vmatprep.mubr.bf16.mxu0 0
  %619 = vmatmul.mubr.bf16.gmra.mxu0 %v512
  %v620 = vpop.f32.mrf.mxu0
  %v621 = vadd.f32 %v536, %v620
  %v622 = vpop.f32.mrf.mxu0
  %v623 = vpop.f32.mrf.mxu0
  %v624 = vadd.f32 %v536, %v623
  %v625 = vpop.f32.mrf.mxu0
  %626 = vdwg.mxu0
  %v627 = vmax.f32 %v621, 0.0
  %v628 = vmax.f32 %v624, 0.0
  %s629 = scalar_lea.vmem %s6, 1
  %v630 = vld [vmem:[%s629] sm:$0x1]
  %v632 = vlaneseq
  %v633 = vshrl.u32 %v632, 7
  %v634 = vsub.s32 0, %v633
  %v635 = vrot.slane %v630, %v634
  %v637 = vmul.f32 %v627, %v635
  %v638 = vmul.f32 %v628, %v635
  %s639 = scalar_lea.vmem %s7, 1
  %v640 = vld [vmem:[%s639] sm:$0x1]
  %v642 = vlaneseq
  %v643 = vshrl.u32 %v642, 7
  %v644 = vsub.s32 0, %v643
  %v645 = vrot.slane %v640, %v644
  %v647 = vadd.f32 %v637, %v645
  %v648 = vadd.f32 %v638, %v645
  %v649 = vpack.c.bf16 %v648, %v647
  %650 = vmatprep.subr.bf16.mxu0 0
  %651 = vmatpush1.bf16.msra.mxu0 0
  %652 = vmatprep.subr.bf16.mxu0 0
  %653 = vmatpush1.bf16.msra.mxu0 0
  %654 = vmatprep.subr.bf16.mxu0 0
  %655 = vmatpush1.bf16.msra.mxu0 0
  %656 = vmatprep.subr.bf16.mxu0 0
  %657 = vmatpush1.bf16.msra.mxu0 0
  %658 = vmatprep.subr.bf16.mxu0 0
  %659 = vmatpush1.bf16.msra.mxu0 0
  %660 = vmatprep.subr.bf16.mxu0 0
  %661 = vmatpush1.bf16.msra.mxu0 0
  %662 = vmatprep.subr.bf16.mxu0 0
  %663 = vmatpush1.bf16.msra.mxu0 0
  %664 = vmatprep.subr.bf16.mxu0 0
  %665 = vmatpush1.bf16.msra.mxu0 %v649
  %666 = vmatprep.subr.bf16.mxu0 0
  %667 = vmatpush2.bf16.msra.mxu0 0
  %668 = vmatprep.subr.bf16.mxu0 0
  %669 = vmatpush2.bf16.msra.mxu0 0
  %670 = vmatprep.subr.bf16.mxu0 0
  %671 = vmatpush2.bf16.msra.mxu0 0
  %672 = vmatprep.subr.bf16.mxu0 0
  %673 = vmatpush2.bf16.msra.mxu0 0
  %674 = vmatprep.subr.bf16.mxu0 0
  %675 = vmatpush2.bf16.msra.mxu0 0
  %676 = vmatprep.subr.bf16.mxu0 0
  %677 = vmatpush2.bf16.msra.mxu0 0
  %678 = vmatprep.subr.bf16.mxu0 0
  %679 = vmatpush2.bf16.msra.mxu0 0
  %680 = vmatprep.subr.bf16.mxu0 0
  %681 = vmatpush2.bf16.msra.mxu0 0
  %682 = vmatprep.mubr.bf16.mxu0 0
  %683 = vmatmul.mubr.bf16.gmra.mxu0 %v62
  %v684 = vpop.f32.mrf.mxu0
  %v685 = vadd.f32 0.0, %v684
  %v686 = vpop.f32.mrf.mxu0
  %v687 = vpop.f32.mrf.mxu0
  %v688 = vadd.f32 0.0, %v687
  %v689 = vpop.f32.mrf.mxu0
  %690 = vdwg.mxu0
  %v691 = vpack.c.bf16 %v688, %v685
  %s692 = scalar_lea.vmem %s2, 128
  %v693 = vld [vmem:[%s692] sm:$0xf]
  %v694 = vld [vmem:[%s692 + $0x4] sm:$0xf]
  %v695 = vld [vmem:[%s692 + $0x8] sm:$0xf]
  %v696 = vld [vmem:[%s692 + $0xc] sm:$0xf]
  %v697 = vld [vmem:[%s692 + $0x10] sm:$0xf]
  %v698 = vld [vmem:[%s692 + $0x14] sm:$0xf]
  %v699 = vld [vmem:[%s692 + $0x18] sm:$0xf]
  %v700 = vld [vmem:[%s692 + $0x1c] sm:$0xf]
  %v701 = vld [vmem:[%s692 + $0x20] sm:$0xf]
  %v702 = vld [vmem:[%s692 + $0x24] sm:$0xf]
  %v703 = vld [vmem:[%s692 + $0x28] sm:$0xf]
  %v704 = vld [vmem:[%s692 + $0x2c] sm:$0xf]
  %v705 = vld [vmem:[%s692 + $0x30] sm:$0xf]
  %v706 = vld [vmem:[%s692 + $0x34] sm:$0xf]
  %v707 = vld [vmem:[%s692 + $0x38] sm:$0xf]
  %v708 = vld [vmem:[%s692 + $0x3c] sm:$0xf]
  %s709 = scalar_lea.vmem %s3, 2
  %v710 = vld [vmem:[%s709] sm:$0x1]
  %v712 = vlaneseq
  %v713 = vshrl.u32 %v712, 7
  %v714 = vsub.s32 0, %v713
  %v715 = vrot.slane %v710, %v714
  %v733 = vunpack.c.l.b16 %v693
  %v734 = vunpack.c.l.b16 %v694
  %v735 = vunpack.c.l.b16 %v695
  %v736 = vunpack.c.l.b16 %v696
  %v737 = vunpack.c.l.b16 %v697
  %v738 = vunpack.c.l.b16 %v698
  %v739 = vunpack.c.l.b16 %v699
  %v740 = vunpack.c.l.b16 %v700
  %v741 = vunpack.c.l.b16 %v701
  %v742 = vunpack.c.l.b16 %v702
  %v743 = vunpack.c.l.b16 %v703
  %v744 = vunpack.c.l.b16 %v704
  %v745 = vunpack.c.l.b16 %v705
  %v746 = vunpack.c.l.b16 %v706
  %v747 = vunpack.c.l.b16 %v707
  %v748 = vunpack.c.l.b16 %v708
  %v749 = vpack.c.b16 %v734, %v733
  %v750 = vpack.c.b16 %v736, %v735
  %v751 = vpack.c.b16 %v738, %v737
  %v752 = vpack.c.b16 %v740, %v739
  %v753 = vpack.c.b16 %v742, %v741
  %v754 = vpack.c.b16 %v744, %v743
  %v755 = vpack.c.b16 %v746, %v745
  %v756 = vpack.c.b16 %v748, %v747
  %765 = vmatprep.subr.bf16.mxu0 0
  %766 = vmatpush1.bf16.msra.mxu0 %v756
  %767 = vmatprep.subr.bf16.mxu0 0
  %768 = vmatpush1.bf16.msra.mxu0 %v755
  %769 = vmatprep.subr.bf16.mxu0 0
  %770 = vmatpush1.bf16.msra.mxu0 %v754
  %771 = vmatprep.subr.bf16.mxu0 0
  %772 = vmatpush1.bf16.msra.mxu0 %v753
  %773 = vmatprep.subr.bf16.mxu0 0
  %774 = vmatpush1.bf16.msra.mxu0 %v752
  %775 = vmatprep.subr.bf16.mxu0 0
  %776 = vmatpush1.bf16.msra.mxu0 %v751
  %777 = vmatprep.subr.bf16.mxu0 0
  %778 = vmatpush1.bf16.msra.mxu0 %v750
  %779 = vmatprep.subr.bf16.mxu0 0
  %780 = vmatpush1.bf16.msra.mxu0 %v749
  %781 = vmatprep.subr.bf16.mxu0 0
  %782 = vmatpush2.bf16.msra.mxu0 0
  %783 = vmatprep.subr.bf16.mxu0 0
  %784 = vmatpush2.bf16.msra.mxu0 0
  %785 = vmatprep.subr.bf16.mxu0 0
  %786 = vmatpush2.bf16.msra.mxu0 0
  %787 = vmatprep.subr.bf16.mxu0 0
  %788 = vmatpush2.bf16.msra.mxu0 0
  %789 = vmatprep.subr.bf16.mxu0 0
  %790 = vmatpush2.bf16.msra.mxu0 0
  %791 = vmatprep.subr.bf16.mxu0 0
  %792 = vmatpush2.bf16.msra.mxu0 0
  %793 = vmatprep.subr.bf16.mxu0 0
  %794 = vmatpush2.bf16.msra.mxu0 0
  %795 = vmatprep.subr.bf16.mxu0 0
  %796 = vmatpush2.bf16.msra.mxu0 0
  %797 = vmatprep.mubr.bf16.mxu0 0
  %798 = vmatmul.mubr.bf16.gmra.mxu0 %v691
  %v799 = vpop.f32.mrf.mxu0
  %v800 = vadd.f32 %v715, %v799
  %v801 = vpop.f32.mrf.mxu0
  %v802 = vpop.f32.mrf.mxu0
  %v803 = vadd.f32 %v715, %v802
  %v804 = vpop.f32.mrf.mxu0
  %805 = vdwg.mxu0
  %v806 = vmax.f32 %v800, 0.0
  %v807 = vmax.f32 %v803, 0.0
  %v808 = vpack.c.bf16 %v807, %v806
  %s809 = scalar_lea.vmem %s4, 128
  %v810 = vld [vmem:[%s809] sm:$0xf]
  %v811 = vld [vmem:[%s809 + $0x4] sm:$0xf]
  %v812 = vld [vmem:[%s809 + $0x8] sm:$0xf]
  %v813 = vld [vmem:[%s809 + $0xc] sm:$0xf]
  %v814 = vld [vmem:[%s809 + $0x10] sm:$0xf]
  %v815 = vld [vmem:[%s809 + $0x14] sm:$0xf]
  %v816 = vld [vmem:[%s809 + $0x18] sm:$0xf]
  %v817 = vld [vmem:[%s809 + $0x1c] sm:$0xf]
  %v818 = vld [vmem:[%s809 + $0x20] sm:$0xf]
  %v819 = vld [vmem:[%s809 + $0x24] sm:$0xf]
  %v820 = vld [vmem:[%s809 + $0x28] sm:$0xf]
  %v821 = vld [vmem:[%s809 + $0x2c] sm:$0xf]
  %v822 = vld [vmem:[%s809 + $0x30] sm:$0xf]
  %v823 = vld [vmem:[%s809 + $0x34] sm:$0xf]
  %v824 = vld [vmem:[%s809 + $0x38] sm:$0xf]
  %v825 = vld [vmem:[%s809 + $0x3c] sm:$0xf]
  %s826 = scalar_lea.vmem %s5, 2
  %v827 = vld [vmem:[%s826] sm:$0x1]
  %v829 = vlaneseq
  %v830 = vshrl.u32 %v829, 7
  %v831 = vsub.s32 0, %v830
  %v832 = vrot.slane %v827, %v831
  %v850 = vunpack.c.l.b16 %v810
  %v851 = vunpack.c.l.b16 %v811
  %v852 = vunpack.c.l.b16 %v812
  %v853 = vunpack.c.l.b16 %v813
  %v854 = vunpack.c.l.b16 %v814
  %v855 = vunpack.c.l.b16 %v815
  %v856 = vunpack.c.l.b16 %v816
  %v857 = vunpack.c.l.b16 %v817
  %v858 = vunpack.c.l.b16 %v818
  %v859 = vunpack.c.l.b16 %v819
  %v860 = vunpack.c.l.b16 %v820
  %v861 = vunpack.c.l.b16 %v821
  %v862 = vunpack.c.l.b16 %v822
  %v863 = vunpack.c.l.b16 %v823
  %v864 = vunpack.c.l.b16 %v824
  %v865 = vunpack.c.l.b16 %v825
  %v866 = vpack.c.b16 %v851, %v850
  %v867 = vpack.c.b16 %v853, %v852
  %v868 = vpack.c.b16 %v855, %v854
  %v869 = vpack.c.b16 %v857, %v856
  %v870 = vpack.c.b16 %v859, %v858
  %v871 = vpack.c.b16 %v861, %v860
  %v872 = vpack.c.b16 %v863, %v862
  %v873 = vpack.c.b16 %v865, %v864
  %882 = vmatprep.subr.bf16.mxu0 0
  %883 = vmatpush1.bf16.msra.mxu0 %v873
  %884 = vmatprep.subr.bf16.mxu0 0
  %885 = vmatpush1.bf16.msra.mxu0 %v872
  %886 = vmatprep.subr.bf16.mxu0 0
  %887 = vmatpush1.bf16.msra.mxu0 %v871
  %888 = vmatprep.subr.bf16.mxu0 0
  %889 = vmatpush1.bf16.msra.mxu0 %v870
  %890 = vmatprep.subr.bf16.mxu0 0
  %891 = vmatpush1.bf16.msra.mxu0 %v869
  %892 = vmatprep.subr.bf16.mxu0 0
  %893 = vmatpush1.bf16.msra.mxu0 %v868
  %894 = vmatprep.subr.bf16.mxu0 0
  %895 = vmatpush1.bf16.msra.mxu0 %v867
  %896 = vmatprep.subr.bf16.mxu0 0
  %897 = vmatpush1.bf16.msra.mxu0 %v866
  %898 = vmatprep.subr.bf16.mxu0 0
  %899 = vmatpush2.bf16.msra.mxu0 0
  %900 = vmatprep.subr.bf16.mxu0 0
  %901 = vmatpush2.bf16.msra.mxu0 0
  %902 = vmatprep.subr.bf16.mxu0 0
  %903 = vmatpush2.bf16.msra.mxu0 0
  %904 = vmatprep.subr.bf16.mxu0 0
  %905 = vmatpush2.bf16.msra.mxu0 0
  %906 = vmatprep.subr.bf16.mxu0 0
  %907 = vmatpush2.bf16.msra.mxu0 0
  %908 = vmatprep.subr.bf16.mxu0 0
  %909 = vmatpush2.bf16.msra.mxu0 0
  %910 = vmatprep.subr.bf16.mxu0 0
  %911 = vmatpush2.bf16.msra.mxu0 0
  %912 = vmatprep.subr.bf16.mxu0 0
  %913 = vmatpush2.bf16.msra.mxu0 0
  %914 = vmatprep.mubr.bf16.mxu0 0
  %915 = vmatmul.mubr.bf16.gmra.mxu0 %v808
  %v916 = vpop.f32.mrf.mxu0
  %v917 = vadd.f32 %v832, %v916
  %v918 = vpop.f32.mrf.mxu0
  %v919 = vpop.f32.mrf.mxu0
  %v920 = vadd.f32 %v832, %v919
  %v921 = vpop.f32.mrf.mxu0
  %922 = vdwg.mxu0
  %v923 = vmax.f32 %v917, 0.0
  %v924 = vmax.f32 %v920, 0.0
  %s925 = scalar_lea.vmem %s6, 2
  %v926 = vld [vmem:[%s925] sm:$0x1]
  %v928 = vlaneseq
  %v929 = vshrl.u32 %v928, 7
  %v930 = vsub.s32 0, %v929
  %v931 = vrot.slane %v926, %v930
  %v933 = vmul.f32 %v923, %v931
  %v934 = vmul.f32 %v924, %v931
  %s935 = scalar_lea.vmem %s7, 2
  %v936 = vld [vmem:[%s935] sm:$0x1]
  %v938 = vlaneseq
  %v939 = vshrl.u32 %v938, 7
  %v940 = vsub.s32 0, %v939
  %v941 = vrot.slane %v936, %v940
  %v943 = vadd.f32 %v933, %v941
  %v944 = vadd.f32 %v934, %v941
  %v945 = vpack.c.bf16 %v944, %v943
  %v946 = vld [vmem:[%s8] sm:$0xf]
  %v948 = vsel %vm60, %v946, 0
  %950 = vmatprep.subr.bf16.mxu0 0
  %951 = vmatpush1.bf16.msra.mxu0 0
  %952 = vmatprep.subr.bf16.mxu0 0
  %953 = vmatpush1.bf16.msra.mxu0 0
  %954 = vmatprep.subr.bf16.mxu0 0
  %955 = vmatpush1.bf16.msra.mxu0 0
  %956 = vmatprep.subr.bf16.mxu0 0
  %957 = vmatpush1.bf16.msra.mxu0 0
  %958 = vmatprep.subr.bf16.mxu0 0
  %959 = vmatpush1.bf16.msra.mxu0 0
  %960 = vmatprep.subr.bf16.mxu0 0
  %961 = vmatpush1.bf16.msra.mxu0 0
  %962 = vmatprep.subr.bf16.mxu0 0
  %963 = vmatpush1.bf16.msra.mxu0 0
  %964 = vmatprep.subr.bf16.mxu0 0
  %965 = vmatpush1.bf16.msra.mxu0 %v945
  %966 = vmatprep.subr.bf16.mxu0 0
  %967 = vmatpush2.bf16.msra.mxu0 0
  %968 = vmatprep.subr.bf16.mxu0 0
  %969 = vmatpush2.bf16.msra.mxu0 0
  %970 = vmatprep.subr.bf16.mxu0 0
  %971 = vmatpush2.bf16.msra.mxu0 0
  %972 = vmatprep.subr.bf16.mxu0 0
  %973 = vmatpush2.bf16.msra.mxu0 0
  %974 = vmatprep.subr.bf16.mxu0 0
  %975 = vmatpush2.bf16.msra.mxu0 0
  %976 = vmatprep.subr.bf16.mxu0 0
  %977 = vmatpush2.bf16.msra.mxu0 0
  %978 = vmatprep.subr.bf16.mxu0 0
  %979 = vmatpush2.bf16.msra.mxu0 0
  %980 = vmatprep.subr.bf16.mxu0 0
  %981 = vmatpush2.bf16.msra.mxu0 0
  %982 = vmatprep.mubr.bf16.mxu0 0
  %983 = vmatmul.mubr.bf16.gmra.mxu0 %v948
  %v984 = vpop.f32.mrf.mxu0
  %v985 = vadd.f32 0.0, %v984
  %v986 = vpop.f32.mrf.mxu0
  %v987 = vpop.f32.mrf.mxu0
  %v988 = vpop.f32.mrf.mxu0
  %989 = vdwg.mxu0
  %v990 = vpack.c.bf16 %v985, %v985
  %v991 = vld [vmem:[%s9] sm:$0xf]
  %v992 = vld [vmem:[%s9 + $0x4] sm:$0xf]
  %v993 = vld [vmem:[%s9 + $0x8] sm:$0xf]
  %v994 = vld [vmem:[%s9 + $0xc] sm:$0xf]
  %v995 = vld [vmem:[%s9 + $0x10] sm:$0xf]
  %v996 = vld [vmem:[%s9 + $0x14] sm:$0xf]
  %v997 = vld [vmem:[%s9 + $0x18] sm:$0xf]
  %v998 = vld [vmem:[%s9 + $0x1c] sm:$0xf]
  %v999 = vld [vmem:[%s9 + $0x20] sm:$0xf]
  %v1000 = vld [vmem:[%s9 + $0x24] sm:$0xf]
  %v1001 = vld [vmem:[%s9 + $0x28] sm:$0xf]
  %v1002 = vld [vmem:[%s9 + $0x2c] sm:$0xf]
  %v1003 = vld [vmem:[%s9 + $0x30] sm:$0xf]
  %v1004 = vld [vmem:[%s9 + $0x34] sm:$0xf]
  %v1005 = vld [vmem:[%s9 + $0x38] sm:$0xf]
  %v1006 = vld [vmem:[%s9 + $0x3c] sm:$0xf]
  %v1007 = vld [vmem:[%s10] sm:$0x1]
  %v1009 = vlaneseq
  %v1010 = vshrl.u32 %v1009, 7
  %v1011 = vsub.s32 0, %v1010
  %v1012 = vrot.slane %v1007, %v1011
  %v1030 = vunpack.c.l.b16 %v991
  %v1031 = vunpack.c.l.b16 %v992
  %v1032 = vunpack.c.l.b16 %v993
  %v1033 = vunpack.c.l.b16 %v994
  %v1034 = vunpack.c.l.b16 %v995
  %v1035 = vunpack.c.l.b16 %v996
  %v1036 = vunpack.c.l.b16 %v997
  %v1037 = vunpack.c.l.b16 %v998
  %v1038 = vunpack.c.l.b16 %v999
  %v1039 = vunpack.c.l.b16 %v1000
  %v1040 = vunpack.c.l.b16 %v1001
  %v1041 = vunpack.c.l.b16 %v1002
  %v1042 = vunpack.c.l.b16 %v1003
  %v1043 = vunpack.c.l.b16 %v1004
  %v1044 = vunpack.c.l.b16 %v1005
  %v1045 = vunpack.c.l.b16 %v1006
  %v1046 = vpack.c.b16 %v1031, %v1030
  %v1047 = vpack.c.b16 %v1033, %v1032
  %v1048 = vpack.c.b16 %v1035, %v1034
  %v1049 = vpack.c.b16 %v1037, %v1036
  %v1050 = vpack.c.b16 %v1039, %v1038
  %v1051 = vpack.c.b16 %v1041, %v1040
  %v1052 = vpack.c.b16 %v1043, %v1042
  %v1053 = vpack.c.b16 %v1045, %v1044
  %1062 = vmatprep.subr.bf16.mxu0 0
  %1063 = vmatpush1.bf16.msra.mxu0 %v1053
  %1064 = vmatprep.subr.bf16.mxu0 0
  %1065 = vmatpush1.bf16.msra.mxu0 %v1052
  %1066 = vmatprep.subr.bf16.mxu0 0
  %1067 = vmatpush1.bf16.msra.mxu0 %v1051
  %1068 = vmatprep.subr.bf16.mxu0 0
  %1069 = vmatpush1.bf16.msra.mxu0 %v1050
  %1070 = vmatprep.subr.bf16.mxu0 0
  %1071 = vmatpush1.bf16.msra.mxu0 %v1049
  %1072 = vmatprep.subr.bf16.mxu0 0
  %1073 = vmatpush1.bf16.msra.mxu0 %v1048
  %1074 = vmatprep.subr.bf16.mxu0 0
  %1075 = vmatpush1.bf16.msra.mxu0 %v1047
  %1076 = vmatprep.subr.bf16.mxu0 0
  %1077 = vmatpush1.bf16.msra.mxu0 %v1046
  %1078 = vmatprep.subr.bf16.mxu0 0
  %1079 = vmatpush2.bf16.msra.mxu0 0
  %1080 = vmatprep.subr.bf16.mxu0 0
  %1081 = vmatpush2.bf16.msra.mxu0 0
  %1082 = vmatprep.subr.bf16.mxu0 0
  %1083 = vmatpush2.bf16.msra.mxu0 0
  %1084 = vmatprep.subr.bf16.mxu0 0
  %1085 = vmatpush2.bf16.msra.mxu0 0
  %1086 = vmatprep.subr.bf16.mxu0 0
  %1087 = vmatpush2.bf16.msra.mxu0 0
  %1088 = vmatprep.subr.bf16.mxu0 0
  %1089 = vmatpush2.bf16.msra.mxu0 0
  %1090 = vmatprep.subr.bf16.mxu0 0
  %1091 = vmatpush2.bf16.msra.mxu0 0
  %1092 = vmatprep.subr.bf16.mxu0 0
  %1093 = vmatpush2.bf16.msra.mxu0 0
  %1094 = vmatprep.mubr.bf16.mxu0 0
  %1095 = vmatmul.mubr.bf16.gmra.mxu0 %v990
  %v1096 = vpop.f32.mrf.mxu0
  %v1097 = vadd.f32 %v1012, %v1096
  %v1098 = vpop.f32.mrf.mxu0
  %v1099 = vpop.f32.mrf.mxu0
  %v1100 = vpop.f32.mrf.mxu0
  %1101 = vdwg.mxu0
  %v1102 = vmax.f32 %v1097, 0.0
  %v1103 = vpack.c.bf16 %v1102, %v1102
  %v1104 = vld [vmem:[%s11] sm:$0xf]
  %v1105 = vld [vmem:[%s11 + $0x4] sm:$0xf]
  %v1106 = vld [vmem:[%s11 + $0x8] sm:$0xf]
  %v1107 = vld [vmem:[%s11 + $0xc] sm:$0xf]
  %v1108 = vld [vmem:[%s11 + $0x10] sm:$0xf]
  %v1109 = vld [vmem:[%s11 + $0x14] sm:$0xf]
  %v1110 = vld [vmem:[%s11 + $0x18] sm:$0xf]
  %v1111 = vld [vmem:[%s11 + $0x1c] sm:$0xf]
  %v1112 = vld [vmem:[%s11 + $0x20] sm:$0xf]
  %v1113 = vld [vmem:[%s11 + $0x24] sm:$0xf]
  %v1114 = vld [vmem:[%s11 + $0x28] sm:$0xf]
  %v1115 = vld [vmem:[%s11 + $0x2c] sm:$0xf]
  %v1116 = vld [vmem:[%s11 + $0x30] sm:$0xf]
  %v1117 = vld [vmem:[%s11 + $0x34] sm:$0xf]
  %v1118 = vld [vmem:[%s11 + $0x38] sm:$0xf]
  %v1119 = vld [vmem:[%s11 + $0x3c] sm:$0xf]
  %v1120 = vld [vmem:[%s12] sm:$0x1]
  %v1122 = vlaneseq
  %v1123 = vshrl.u32 %v1122, 7
  %v1124 = vsub.s32 0, %v1123
  %v1125 = vrot.slane %v1120, %v1124
  %v1143 = vunpack.c.l.b16 %v1104
  %v1144 = vunpack.c.l.b16 %v1105
  %v1145 = vunpack.c.l.b16 %v1106
  %v1146 = vunpack.c.l.b16 %v1107
  %v1147 = vunpack.c.l.b16 %v1108
  %v1148 = vunpack.c.l.b16 %v1109
  %v1149 = vunpack.c.l.b16 %v1110
  %v1150 = vunpack.c.l.b16 %v1111
  %v1151 = vunpack.c.l.b16 %v1112
  %v1152 = vunpack.c.l.b16 %v1113
  %v1153 = vunpack.c.l.b16 %v1114
  %v1154 = vunpack.c.l.b16 %v1115
  %v1155 = vunpack.c.l.b16 %v1116
  %v1156 = vunpack.c.l.b16 %v1117
  %v1157 = vunpack.c.l.b16 %v1118
  %v1158 = vunpack.c.l.b16 %v1119
  %v1159 = vpack.c.b16 %v1144, %v1143
  %v1160 = vpack.c.b16 %v1146, %v1145
  %v1161 = vpack.c.b16 %v1148, %v1147
  %v1162 = vpack.c.b16 %v1150, %v1149
  %v1163 = vpack.c.b16 %v1152, %v1151
  %v1164 = vpack.c.b16 %v1154, %v1153
  %v1165 = vpack.c.b16 %v1156, %v1155
  %v1166 = vpack.c.b16 %v1158, %v1157
  %1175 = vmatprep.subr.bf16.mxu0 0
  %1176 = vmatpush1.bf16.msra.mxu0 %v1166
  %1177 = vmatprep.subr.bf16.mxu0 0
  %1178 = vmatpush1.bf16.msra.mxu0 %v1165
  %1179 = vmatprep.subr.bf16.mxu0 0
  %1180 = vmatpush1.bf16.msra.mxu0 %v1164
  %1181 = vmatprep.subr.bf16.mxu0 0
  %1182 = vmatpush1.bf16.msra.mxu0 %v1163
  %1183 = vmatprep.subr.bf16.mxu0 0
  %1184 = vmatpush1.bf16.msra.mxu0 %v1162
  %1185 = vmatprep.subr.bf16.mxu0 0
  %1186 = vmatpush1.bf16.msra.mxu0 %v1161
  %1187 = vmatprep.subr.bf16.mxu0 0
  %1188 = vmatpush1.bf16.msra.mxu0 %v1160
  %1189 = vmatprep.subr.bf16.mxu0 0
  %1190 = vmatpush1.bf16.msra.mxu0 %v1159
  %1191 = vmatprep.subr.bf16.mxu0 0
  %1192 = vmatpush2.bf16.msra.mxu0 0
  %1193 = vmatprep.subr.bf16.mxu0 0
  %1194 = vmatpush2.bf16.msra.mxu0 0
  %1195 = vmatprep.subr.bf16.mxu0 0
  %1196 = vmatpush2.bf16.msra.mxu0 0
  %1197 = vmatprep.subr.bf16.mxu0 0
  %1198 = vmatpush2.bf16.msra.mxu0 0
  %1199 = vmatprep.subr.bf16.mxu0 0
  %1200 = vmatpush2.bf16.msra.mxu0 0
  %1201 = vmatprep.subr.bf16.mxu0 0
  %1202 = vmatpush2.bf16.msra.mxu0 0
  %1203 = vmatprep.subr.bf16.mxu0 0
  %1204 = vmatpush2.bf16.msra.mxu0 0
  %1205 = vmatprep.subr.bf16.mxu0 0
  %1206 = vmatpush2.bf16.msra.mxu0 0
  %1207 = vmatprep.mubr.bf16.mxu0 0
  %1208 = vmatmul.mubr.bf16.gmra.mxu0 %v1103
  %v1209 = vpop.f32.mrf.mxu0
  %v1210 = vadd.f32 %v1125, %v1209
  %v1211 = vpop.f32.mrf.mxu0
  %v1212 = vpop.f32.mrf.mxu0
  %v1213 = vpop.f32.mrf.mxu0
  %1214 = vdwg.mxu0
  %1215 = vmax.xlane.f32.xlu0 %v1210
  %v1216 = vpop.xlane.xlu0 %1215
  %v1217 = vsub.f32 %v1210, %v1216
  %v1218 = vmul.f32 %v1217, 1.442695
  %v1219 = vpow.pop %v1218
  %1220 = vadd.xlane.f32.xlu0 %v1219
  %v1221 = vpop.xlane.xlu0 %1220
  %v1222 = vlog2.pop %v1221
  %v1223 = vmul.f32 %v1222, 0.6931472
  %v1224 = vsub.f32 %v1217, %v1223
  %1225 = vst [vmem:[%s13] sm:$0xff] %v1224
  // Predicated region
  $region54: #{gin_forward.1} parent=0 // pred_check
    _
  $region55: #{gin_forward.1} parent=0 // pred_check_branch
    %1227 = sbr.rel (0) target = $region57
  $region56: #{gin_forward.1} parent=0 // pred_region
    _
  $region57: #{gin_forward.1} parent=0 // pred_fallthru
    _
  // Predicated region
  $region58: #{gin_forward.1} parent=0 // pred_check
    _
  $region59: #{gin_forward.1} parent=0 // pred_check_branch
    %1229 = sbr.rel (0) target = $region61
  $region60: #{gin_forward.1} parent=0 // pred_region
    _
  $region61: #{gin_forward.1} parent=0 // pred_fallthru
    _

</llo_original>
